<compile_context>
chip_gen: v7x
topology: tpu7x:2x2x1
jax: 0.10.0
libtpu: 0.0.40
codegen_flags: <defaults>
</compile_context>

<pallas_src>
import jax
import jax.numpy as jnp
from jax.experimental import pallas as pl
from jax.experimental.pallas import tpu as pltpu

LOG_STD_MAX = 2.0
LOG_STD_MIN = -20.0


def _round_up(x, m):
    return ((x + m - 1) // m) * m


def _actor_kernel(x_ref,
                  w1_ref, b1_ref,
                  w2_ref, b2_ref,
                  w3_ref, b3_ref,
                  wh_ref, bh_ref,
                  out_ref):
    # x: f32 [TB, obs_dim] -> bf16 for the MXU; weights bf16 [in, out];
    # biases f32 [1, out]; all accumulation / bias / ReLU in f32.
    x = x_ref[...].astype(jnp.bfloat16)

    h = jnp.dot(x, w1_ref[...], preferred_element_type=jnp.float32) + b1_ref[...]
    h = jnp.maximum(h, 0.0).astype(jnp.bfloat16)

    h = jnp.dot(h, w2_ref[...], preferred_element_type=jnp.float32) + b2_ref[...]
    h = jnp.maximum(h, 0.0).astype(jnp.bfloat16)

    h = jnp.dot(h, w3_ref[...], preferred_element_type=jnp.float32) + b3_ref[...]
    h = jnp.maximum(h, 0.0).astype(jnp.bfloat16)

    # Fused heads: columns [0, act_dim) = mean, [act_dim, 2*act_dim) = log_std,
    # remaining columns are zero padding (sliced away in the wrapper).
    y = jnp.dot(h, wh_ref[...], preferred_element_type=jnp.float32) + bh_ref[...]

    # bf16 store halves HBM writeback of the (lane-dense, padded) output slab.
    out_ref[...] = y.astype(out_ref.dtype)


def prepare_params(params):
    """One-time parameter prep (call once, outside the per-step forward path).

    Fuses fc_mean / fc_logstd into a single lane-dense (128-padded) head and
    casts all matmul weights to bf16. Biases stay f32.
    """
    act_dim = params["wm"].shape[1]
    head_w = jnp.concatenate([params["wm"], params["ws"]], axis=1)   # [hidden, 2*act_dim]
    head_b = jnp.concatenate([params["bm"], params["bs"]], axis=1)   # [1, 2*act_dim]
    P = max(128, _round_up(2 * act_dim, 128))
    pad_cols = P - 2 * act_dim
    if pad_cols > 0:
        head_w = jnp.pad(head_w, ((0, 0), (0, pad_cols)))
        head_b = jnp.pad(head_b, ((0, 0), (0, pad_cols)))

    return dict(
        w1=params["w1"].astype(jnp.bfloat16), b1=params["b1"],
        w2=params["w2"].astype(jnp.bfloat16), b2=params["b2"],
        w3=params["w3"].astype(jnp.bfloat16), b3=params["b3"],
        wh=head_w.astype(jnp.bfloat16), bh=head_b,
        act_dim=act_dim, P=P,
    )


def actor_forward(x, prep, *, block_b=2048, num_batch_splits=1):
    """Fused Actor forward pass as a single Pallas kernel.

    x:    [B, obs_dim] float32
    prep: output of prepare_params()
    returns (mean [B, act_dim], log_std [B, act_dim]) in float32
    """
    B, obs_dim = x.shape
    hidden = prep["w1"].shape[1]
    act_dim = prep["act_dim"]
    P = prep["P"]

    # Batch tile: aim for `num_batch_splits` equal grid steps (use 2 to balance
    # v7x's two TensorCores for large batches), capped at block_b to bound the
    # per-step VMEM working set. Weights stay resident across steps.
    TB = min(block_b, _round_up(max(pl.cdiv(B, num_batch_splits), 1), 8))
    grid = (pl.cdiv(B, TB),)

    out = pl.pallas_call(
        _actor_kernel,
        out_shape=jax.ShapeDtypeStruct((B, P), jnp.bfloat16),
        grid=grid,
        in_specs=[
            pl.BlockSpec((TB, obs_dim), lambda i: (i, 0)),        # x: tiled over batch
            pl.BlockSpec((obs_dim, hidden), lambda i: (0, 0)),    # w1 (VMEM-resident)
            pl.BlockSpec((1, hidden), lambda i: (0, 0)),          # b1
            pl.BlockSpec((hidden, hidden), lambda i: (0, 0)),     # w2
            pl.BlockSpec((1, hidden), lambda i: (0, 0)),          # b2
            pl.BlockSpec((hidden, hidden), lambda i: (0, 0)),     # w3
            pl.BlockSpec((1, hidden), lambda i: (0, 0)),          # b3
            pl.BlockSpec((hidden, P), lambda i: (0, 0)),          # fused head W
            pl.BlockSpec((1, P), lambda i: (0, 0)),               # fused head b
        ],
        out_specs=pl.BlockSpec((TB, P), lambda i: (i, 0)),
        compiler_params=pltpu.CompilerParams(
            dimension_semantics=("parallel",)),
    )(x, prep["w1"], prep["b1"], prep["w2"], prep["b2"],
      prep["w3"], prep["b3"], prep["wh"], prep["bh"])

    head = out[:, :2 * act_dim].astype(jnp.float32)
    mean = head[:, :act_dim]
    log_std = jnp.clip(head[:, act_dim:], LOG_STD_MIN, LOG_STD_MAX)
    return mean, log_std


def init_params(key, obs_dim, hidden, act_dim):
    """Deterministic parameter init (uniform +/- 1/sqrt(fan_in), like nn.Linear)."""
    def linear(key, fan_in, fan_out):
        kw, kb = jax.random.split(key)
        bound = 1.0 / jnp.sqrt(jnp.float32(fan_in))
        w = jax.random.uniform(kw, (fan_in, fan_out), jnp.float32, -bound, bound)
        b = jax.random.uniform(kb, (1, fan_out), jnp.float32, -bound, bound)
        return w, b

    k1, k2, k3, k4, k5 = jax.random.split(key, 5)
    w1, b1 = linear(k1, obs_dim, hidden)
    w2, b2 = linear(k2, hidden, hidden)
    w3, b3 = linear(k3, hidden, hidden)
    wm, bm = linear(k4, hidden, act_dim)
    ws, bs = linear(k5, hidden, act_dim)
    return dict(w1=w1, b1=b1, w2=w2, b2=b2, w3=w3, b3=b3,
                wm=wm, bm=bm, ws=ws, bs=bs)


def actor_forward_ref(x, p):
    """Plain-JAX (f32) reference for validation."""
    h = jax.nn.relu(x @ p["w1"] + p["b1"])
    h = jax.nn.relu(h @ p["w2"] + p["b2"])
    h = jax.nn.relu(h @ p["w3"] + p["b3"])
    mean = h @ p["wm"] + p["bm"]
    log_std = jnp.clip(h @ p["ws"] + p["bs"], LOG_STD_MIN, LOG_STD_MAX)
    return mean, log_std


if __name__ == "__main__":
    # Small shapes consistent with a flat-observation continuous-control env.
    B, OBS_DIM, HIDDEN, ACT_DIM = 2, 12, 32, 4

    key = jax.random.PRNGKey(0)
    kx, kp = jax.random.split(key)
    x = jax.random.normal(kx, (B, OBS_DIM), jnp.float32)
    params = init_params(kp, OBS_DIM, HIDDEN, ACT_DIM)
    prep = prepare_params(params)          # one-time prep, outside the hot path

    # Latency path (acting loop): B=2 -> single grid step, no wrapper pad/cast.
    mean, log_std = actor_forward(x, prep)
    jax.block_until_ready((mean, log_std))

    mean_ref, log_std_ref = actor_forward_ref(x, params)
    # bf16 matmul operands / bf16 output with f32 accumulation -> loose tolerance.
    assert jnp.allclose(mean, mean_ref, atol=5e-2, rtol=5e-2)
    assert jnp.allclose(log_std, log_std_ref, atol=5e-2, rtol=5e-2)
    assert mean.shape == (B, ACT_DIM) and log_std.shape == (B, ACT_DIM)
    assert float(log_std.max()) <= LOG_STD_MAX and float(log_std.min()) >= LOG_STD_MIN

    # Throughput path: larger (non-multiple-of-8) batch. num_batch_splits=2
    # exercises the multi-step grid (and the v7x two-TensorCore balanced split),
    # including a ragged last block that Pallas handles without wrapper padding.
    B2 = 1500
    x2 = jax.random.normal(jax.random.PRNGKey(1), (B2, OBS_DIM), jnp.float32)
    mean2, log_std2 = actor_forward(x2, prep, num_batch_splits=2)
    jax.block_until_ready((mean2, log_std2))
    mean2_ref, log_std2_ref = actor_forward_ref(x2, params)
    assert jnp.allclose(mean2, mean2_ref, atol=5e-2, rtol=5e-2)
    assert jnp.allclose(log_std2, log_std2_ref, atol=5e-2, rtol=5e-2)
    assert mean2.shape == (B2, ACT_DIM) and log_std2.shape == (B2, ACT_DIM)

    # TODO(synk): get_action() (tanh-squashed Gaussian rsample, log_prob with
    # action_scale/action_bias buffers) is stochastic glue around this forward
    # pass and is intentionally left in plain JAX.
    print("KERNEL_OK")
</pallas_src>

<mosaic_0001>
module attributes {stable_mosaic.version = 11 : i64} {
  func.func @_actor_kernel(%arg0: i32, %arg1: memref<8x12xf32, #tpu.memory_space<vmem>>, %arg2: memref<12x32xbf16, #tpu.memory_space<vmem>>, %arg3: memref<1x32xf32, #tpu.memory_space<vmem>>, %arg4: memref<32x32xbf16, #tpu.memory_space<vmem>>, %arg5: memref<1x32xf32, #tpu.memory_space<vmem>>, %arg6: memref<32x32xbf16, #tpu.memory_space<vmem>>, %arg7: memref<1x32xf32, #tpu.memory_space<vmem>>, %arg8: memref<32x128xbf16, #tpu.memory_space<vmem>>, %arg9: memref<1x128xf32, #tpu.memory_space<vmem>>, %arg10: memref<8x128xbf16, #tpu.memory_space<vmem>>) attributes {dimension_semantics = [#tpu.dimension_semantics<parallel>], iteration_bounds = array<i64: 1>, scalar_prefetch = 0 : i64, scratch_operands = 0 : i64, tpu.core_type = #tpu.core_type<tc>, window_params = [{transform_indices = @transform_0, window_bounds = array<i64: 8, 12>}, {pipeline_mode = #tpu.pipeline_mode<synchronous>, transform_indices = @transform_1, window_bounds = array<i64: 12, 32>}, {pipeline_mode = #tpu.pipeline_mode<synchronous>, transform_indices = @transform_2, window_bounds = array<i64: 1, 32>}, {pipeline_mode = #tpu.pipeline_mode<synchronous>, transform_indices = @transform_3, window_bounds = array<i64: 32, 32>}, {pipeline_mode = #tpu.pipeline_mode<synchronous>, transform_indices = @transform_4, window_bounds = array<i64: 1, 32>}, {pipeline_mode = #tpu.pipeline_mode<synchronous>, transform_indices = @transform_5, window_bounds = array<i64: 32, 32>}, {pipeline_mode = #tpu.pipeline_mode<synchronous>, transform_indices = @transform_6, window_bounds = array<i64: 1, 32>}, {pipeline_mode = #tpu.pipeline_mode<synchronous>, transform_indices = @transform_7, window_bounds = array<i64: 32, 128>}, {pipeline_mode = #tpu.pipeline_mode<synchronous>, transform_indices = @transform_8, window_bounds = array<i64: 1, 128>}, {transform_indices = @transform_9, window_bounds = array<i64: 8, 128>}]} {
    %c0 = arith.constant 0 : index
    %c0_0 = arith.constant 0 : index
    %0 = vector.load %arg1[%c0, %c0_0] : memref<8x12xf32, #tpu.memory_space<vmem>>, vector<8x12xf32>
    %1 = arith.truncf %0 : vector<8x12xf32> to vector<8x12xbf16>
    %c0_1 = arith.constant 0 : index
    %c0_2 = arith.constant 0 : index
    %2 = vector.load %arg2[%c0_1, %c0_2] : memref<12x32xbf16, #tpu.memory_space<vmem>>, vector<12x32xbf16>
    %cst = arith.constant dense<0.000000e+00> : vector<8x32xf32>
    %3 = tpu.matmul %1, %2, %cst {dimension_numbers = #tpu.dot_dimension_numbers<[1], [0], [0], [1], [0, 0, 1, 1], [], []>} : vector<8x12xbf16>, vector<12x32xbf16>, vector<8x32xf32> -> vector<8x32xf32>
    %c0_3 = arith.constant 0 : index
    %c0_4 = arith.constant 0 : index
    %4 = vector.load %arg3[%c0_3, %c0_4] : memref<1x32xf32, #tpu.memory_space<vmem>>, vector<1x32xf32>
    %5 = vector.broadcast %4 : vector<1x32xf32> to vector<8x32xf32>
    %6 = arith.addf %3, %5 : vector<8x32xf32>
    %cst_5 = arith.constant 0.000000e+00 : f32
    %7 = vector.broadcast %cst_5 : f32 to vector<8x32xf32>
    %8 = arith.maximumf %6, %7 : vector<8x32xf32>
    %9 = arith.truncf %8 : vector<8x32xf32> to vector<8x32xbf16>
    %c0_6 = arith.constant 0 : index
    %c0_7 = arith.constant 0 : index
    %10 = vector.load %arg4[%c0_6, %c0_7] : memref<32x32xbf16, #tpu.memory_space<vmem>>, vector<32x32xbf16>
    %cst_8 = arith.constant dense<0.000000e+00> : vector<8x32xf32>
    %11 = tpu.matmul %9, %10, %cst_8 {dimension_numbers = #tpu.dot_dimension_numbers<[1], [0], [0], [1], [0, 0, 1, 1], [], []>} : vector<8x32xbf16>, vector<32x32xbf16>, vector<8x32xf32> -> vector<8x32xf32>
    %c0_9 = arith.constant 0 : index
    %c0_10 = arith.constant 0 : index
    %12 = vector.load %arg5[%c0_9, %c0_10] : memref<1x32xf32, #tpu.memory_space<vmem>>, vector<1x32xf32>
    %13 = vector.broadcast %12 : vector<1x32xf32> to vector<8x32xf32>
    %14 = arith.addf %11, %13 : vector<8x32xf32>
    %cst_11 = arith.constant 0.000000e+00 : f32
    %15 = vector.broadcast %cst_11 : f32 to vector<8x32xf32>
    %16 = arith.maximumf %14, %15 : vector<8x32xf32>
    %17 = arith.truncf %16 : vector<8x32xf32> to vector<8x32xbf16>
    %c0_12 = arith.constant 0 : index
    %c0_13 = arith.constant 0 : index
    %18 = vector.load %arg6[%c0_12, %c0_13] : memref<32x32xbf16, #tpu.memory_space<vmem>>, vector<32x32xbf16>
    %cst_14 = arith.constant dense<0.000000e+00> : vector<8x32xf32>
    %19 = tpu.matmul %17, %18, %cst_14 {dimension_numbers = #tpu.dot_dimension_numbers<[1], [0], [0], [1], [0, 0, 1, 1], [], []>} : vector<8x32xbf16>, vector<32x32xbf16>, vector<8x32xf32> -> vector<8x32xf32>
    %c0_15 = arith.constant 0 : index
    %c0_16 = arith.constant 0 : index
    %20 = vector.load %arg7[%c0_15, %c0_16] : memref<1x32xf32, #tpu.memory_space<vmem>>, vector<1x32xf32>
    %21 = vector.broadcast %20 : vector<1x32xf32> to vector<8x32xf32>
    %22 = arith.addf %19, %21 : vector<8x32xf32>
    %cst_17 = arith.constant 0.000000e+00 : f32
    %23 = vector.broadcast %cst_17 : f32 to vector<8x32xf32>
    %24 = arith.maximumf %22, %23 : vector<8x32xf32>
    %25 = arith.truncf %24 : vector<8x32xf32> to vector<8x32xbf16>
    %c0_18 = arith.constant 0 : index
    %c0_19 = arith.constant 0 : index
    %26 = vector.load %arg8[%c0_18, %c0_19] : memref<32x128xbf16, #tpu.memory_space<vmem>>, vector<32x128xbf16>
    %cst_20 = arith.constant dense<0.000000e+00> : vector<8x128xf32>
    %27 = tpu.matmul %25, %26, %cst_20 {dimension_numbers = #tpu.dot_dimension_numbers<[1], [0], [0], [1], [0, 0, 1, 1], [], []>} : vector<8x32xbf16>, vector<32x128xbf16>, vector<8x128xf32> -> vector<8x128xf32>
    %c0_21 = arith.constant 0 : index
    %c0_22 = arith.constant 0 : index
    %28 = vector.load %arg9[%c0_21, %c0_22] : memref<1x128xf32, #tpu.memory_space<vmem>>, vector<1x128xf32>
    %29 = vector.broadcast %28 : vector<1x128xf32> to vector<8x128xf32>
    %30 = arith.addf %27, %29 : vector<8x128xf32>
    %31 = arith.truncf %30 : vector<8x128xf32> to vector<8x128xbf16>
    %c0_23 = arith.constant 0 : index
    %c0_24 = arith.constant 0 : index
    %32 = vector.load %arg10[%c0_23, %c0_24] : memref<8x128xbf16, #tpu.memory_space<vmem>>, vector<8x128xbf16>
    tpu.vector_store %arg10[%c0_23, %c0_24], %31 {strides = array<i32>} : memref<8x128xbf16, #tpu.memory_space<vmem>>, vector<8x128xbf16>,
    return
  }
  func.func @transform_0(%arg0: i32) -> (i32, i32) {
    %c0_i32 = arith.constant 0 : i32
    %c0_i32_0 = arith.constant 0 : i32
    return %arg0, %c0_i32 : i32, i32
  }
  func.func @transform_1(%arg0: i32) -> (i32, i32) {
    %c0_i32 = arith.constant 0 : i32
    %c0_i32_0 = arith.constant 0 : i32
    %c0_i32_1 = arith.constant 0 : i32
    return %c0_i32, %c0_i32_0 : i32, i32
  }
  func.func @transform_2(%arg0: i32) -> (i32, i32) {
    %c0_i32 = arith.constant 0 : i32
    %c0_i32_0 = arith.constant 0 : i32
    %c0_i32_1 = arith.constant 0 : i32
    return %c0_i32, %c0_i32_0 : i32, i32
  }
  func.func @transform_3(%arg0: i32) -> (i32, i32) {
    %c0_i32 = arith.constant 0 : i32
    %c0_i32_0 = arith.constant 0 : i32
    %c0_i32_1 = arith.constant 0 : i32
    return %c0_i32, %c0_i32_0 : i32, i32
  }
  func.func @transform_4(%arg0: i32) -> (i32, i32) {
    %c0_i32 = arith.constant 0 : i32
    %c0_i32_0 = arith.constant 0 : i32
    %c0_i32_1 = arith.constant 0 : i32
    return %c0_i32, %c0_i32_0 : i32, i32
  }
  func.func @transform_5(%arg0: i32) -> (i32, i32) {
    %c0_i32 = arith.constant 0 : i32
    %c0_i32_0 = arith.constant 0 : i32
    %c0_i32_1 = arith.constant 0 : i32
    return %c0_i32, %c0_i32_0 : i32, i32
  }
  func.func @transform_6(%arg0: i32) -> (i32, i32) {
    %c0_i32 = arith.constant 0 : i32
    %c0_i32_0 = arith.constant 0 : i32
    %c0_i32_1 = arith.constant 0 : i32
    return %c0_i32, %c0_i32_0 : i32, i32
  }
  func.func @transform_7(%arg0: i32) -> (i32, i32) {
    %c0_i32 = arith.constant 0 : i32
    %c0_i32_0 = arith.constant 0 : i32
    %c0_i32_1 = arith.constant 0 : i32
    return %c0_i32, %c0_i32_0 : i32, i32
  }
  func.func @transform_8(%arg0: i32) -> (i32, i32) {
    %c0_i32 = arith.constant 0 : i32
    %c0_i32_0 = arith.constant 0 : i32
    %c0_i32_1 = arith.constant 0 : i32
    return %c0_i32, %c0_i32_0 : i32, i32
  }
  func.func @transform_9(%arg0: i32) -> (i32, i32) {
    %c0_i32 = arith.constant 0 : i32
    %c0_i32_0 = arith.constant 0 : i32
    return %arg0, %c0_i32 : i32, i32
  }
}

</mosaic_0001>

<llo_original>
// kernel: tpu_custom_call.1
$region0: #{tpu_custom_call.1}
  #allocation0 [shape = 'u32[]', space=smem, size = 0x4, offset = 0x4, fixed_abs, tag = 'smem constant byte address 0x4 - core index']
  #allocation1 [shape = 'u32[144,128]{1,0:T(1,128)}', space=vmem, size = 0x12000, scoped, tag = 'internal scratch']
  %s0 = inlined_call_operand.hbm [shape: f32[2,12], index: 0, kind: input, shape index: {}]
  %s1 = inlined_call_operand.hbm [shape: bf16[12,32], index: 1, kind: input, shape index: {}]
  %s2 = inlined_call_operand.vmem [shape: f32[1,32], index: 2, kind: input, shape index: {}]
  %s3 = inlined_call_operand.hbm [shape: bf16[32,32], index: 3, kind: input, shape index: {}]
  %s4 = inlined_call_operand.vmem [shape: f32[1,32], index: 4, kind: input, shape index: {}]
  %s5 = inlined_call_operand.vmem [shape: bf16[32,32], index: 5, kind: input, shape index: {}]
  %s6 = inlined_call_operand.vmem [shape: f32[1,32], index: 6, kind: input, shape index: {}]
  %s7 = inlined_call_operand.hbm [shape: bf16[32,128], index: 7, kind: input, shape index: {}]
  %s8 = inlined_call_operand.vmem [shape: f32[1,128], index: 8, kind: input, shape index: {}]
  %s9 = inlined_call_operand.hbm [shape: bf16[2,128], index: 9, kind: output, shape index: {}]
  %s10 = sld [smem:[#allocation0]]
  $region62: #{tpu_custom_call.1} parent=0
    _
  %s12 = ssub.s32 1, %s10
  %s13 = scalar_select 0, %s12, %s10
  $region1: #{tpu_custom_call.1} parent=0
    #allocation2 [shape = 'u8[4096]{0}', space=vmem, size = 0x1000, scoped, tag = 'input window, operand 0, single buffered']
    #allocation3 [shape = 's32[1]{0}', space=sflag, size = 0x4, scoped, tag = 'scoped memory for tpu_custom_call.1']
    #allocation4 [shape = 's32[1]{0}', space=sflag, size = 0x4, scoped, tag = 'scoped memory for tpu_custom_call.1']
    #allocation5 [shape = 'u8[4096]{0}', space=vmem, size = 0x1000, scoped, tag = 'input window, operand 1, single buffered']
    #allocation6 [shape = 's32[1]{0}', space=sflag, size = 0x4, scoped, tag = 'scoped memory for tpu_custom_call.1']
    #allocation7 [shape = 'u8[8192]{0}', space=vmem, size = 0x2000, scoped, tag = 'input window, operand 3, single buffered']
    #allocation8 [shape = 'u8[8192]{0}', space=vmem, size = 0x2000, scoped, tag = 'input window, operand 7, single buffered']
    #allocation9 [shape = 's32[1]{0}', space=sflag, size = 0x4, scoped, tag = 'scoped memory for tpu_custom_call.1']
    #allocation10 [shape = 'u8[2048]{0}', space=vmem, size = 0x800, scoped, tag = 'output window, operand 0, single buffered']
    %14 = vsyncpa [#allocation3], 0
    %15 = vsyncpa [#allocation6], 0
    %16 = vsyncpa [#allocation9], 0
    %17 = vsyncpa [#allocation4], 0
    // Predicated region
    $region2: #{tpu_custom_call.1} parent=1 // pred_check
      _
    $region3: #{tpu_custom_call.1} parent=1 // pred_check_branch
      %19 = sbr.rel (0) target = $region5
    $region4: #{tpu_custom_call.1} parent=1 // pred_region
      %s21 = ssub.s32 128, 32
      %22 = vsyncadd [#allocation3], %s21
      %s23 = sshll.u32 [#allocation2], 4
      %s24 = int_to_ptr.vmem [resolvable:$true] %s23
      %29 = dma.hbm_to_vmem [thread:$0]  %s0, 32, %s24, [#allocation3], 32, 32, 2
    $region5: #{tpu_custom_call.1} parent=1 // pred_fallthru
      _
    // Predicated region
    $region6: #{tpu_custom_call.1} parent=1 // pred_check
      _
    $region7: #{tpu_custom_call.1} parent=1 // pred_check_branch
      %31 = sbr.rel (0) target = $region9
    $region8: #{tpu_custom_call.1} parent=1 // pred_region
      %s33 = ssub.s32 128, 128
      %34 = vsyncadd [#allocation6], %s33
      %s35 = sshll.u32 [#allocation5], 4
      %s36 = int_to_ptr.vmem [resolvable:$true] %s35
      %41 = dma.hbm_to_vmem [thread:$0]  %s1, 128, %s36, [#allocation6], 64, 64, 4
    $region9: #{tpu_custom_call.1} parent=1 // pred_fallthru
      _
    // Predicated region
    $region10: #{tpu_custom_call.1} parent=1 // pred_check
      _
    $region11: #{tpu_custom_call.1} parent=1 // pred_check_branch
      %43 = sbr.rel (0) target = $region13
    $region12: #{tpu_custom_call.1} parent=1 // pred_region
      _
    $region13: #{tpu_custom_call.1} parent=1 // pred_fallthru
      _
    // Predicated region
    $region14: #{tpu_custom_call.1} parent=1 // pred_check
      _
    $region15: #{tpu_custom_call.1} parent=1 // pred_check_branch
      %45 = sbr.rel (0) target = $region17
    $region16: #{tpu_custom_call.1} parent=1 // pred_region
      %s47 = ssub.s32 256, 256
      %48 = vsyncadd [#allocation6], %s47
      %s49 = sshll.u32 [#allocation7], 4
      %s50 = int_to_ptr.vmem [resolvable:$true] %s49
      %55 = dma.hbm_to_vmem [thread:$0]  %s3, 256, %s50, [#allocation6], 64, 64, 4
    $region17: #{tpu_custom_call.1} parent=1 // pred_fallthru
      _
    // Predicated region
    $region18: #{tpu_custom_call.1} parent=1 // pred_check
      _
    $region19: #{tpu_custom_call.1} parent=1 // pred_check_branch
      %57 = sbr.rel (0) target = $region21
    $region20: #{tpu_custom_call.1} parent=1 // pred_region
      _
    $region21: #{tpu_custom_call.1} parent=1 // pred_fallthru
      _
    // Predicated region
    $region22: #{tpu_custom_call.1} parent=1 // pred_check
      _
    $region23: #{tpu_custom_call.1} parent=1 // pred_check_branch
      %59 = sbr.rel (0) target = $region25
    $region24: #{tpu_custom_call.1} parent=1 // pred_region
      _
    $region25: #{tpu_custom_call.1} parent=1 // pred_fallthru
      _
    // Predicated region
    $region26: #{tpu_custom_call.1} parent=1 // pred_check
      _
    $region27: #{tpu_custom_call.1} parent=1 // pred_check_branch
      %61 = sbr.rel (0) target = $region29
    $region28: #{tpu_custom_call.1} parent=1 // pred_region
      _
    $region29: #{tpu_custom_call.1} parent=1 // pred_fallthru
      _
    // Predicated region
    $region30: #{tpu_custom_call.1} parent=1 // pred_check
      _
    $region31: #{tpu_custom_call.1} parent=1 // pred_check_branch
      %63 = sbr.rel (0) target = $region33
    $region32: #{tpu_custom_call.1} parent=1 // pred_region
      %s65 = ssub.s32 256, 256
      %66 = vsyncadd [#allocation9], %s65
      %s67 = sshll.u32 [#allocation8], 4
      %s68 = int_to_ptr.vmem [resolvable:$true] %s67
      %73 = dma.hbm_to_vmem [thread:$0]  %s7, 256, %s68, [#allocation9], 64, 64, 4
    $region33: #{tpu_custom_call.1} parent=1 // pred_fallthru
      _
    // Predicated region
    $region34: #{tpu_custom_call.1} parent=1 // pred_check
      _
    $region35: #{tpu_custom_call.1} parent=1 // pred_check_branch
      %75 = sbr.rel (0) target = $region37
    $region36: #{tpu_custom_call.1} parent=1 // pred_region
      _
    $region37: #{tpu_custom_call.1} parent=1 // pred_fallthru
      _
    // Predicated region
    $region38: #{tpu_custom_call.1} parent=1 // pred_check
      _
    $region39: #{tpu_custom_call.1} parent=1 // pred_check_branch
      %77 = sbr.rel (0) target = $region41
    $region40: #{tpu_custom_call.1} parent=1 // pred_region
      %78 = dma.done [#allocation3], 128
    $region41: #{tpu_custom_call.1} parent=1 // pred_fallthru
      _
    // Predicated region
    $region42: #{tpu_custom_call.1} parent=1 // pred_check
      _
    $region43: #{tpu_custom_call.1} parent=1 // pred_check_branch
      %80 = sbr.rel (0) target = $region45
    $region44: #{tpu_custom_call.1} parent=1 // pred_region
      %81 = dma.done [#allocation6], 128
    $region45: #{tpu_custom_call.1} parent=1 // pred_fallthru
      _
    // Predicated region
    $region46: #{tpu_custom_call.1} parent=1 // pred_check
      _
    $region47: #{tpu_custom_call.1} parent=1 // pred_check_branch
      %83 = sbr.rel (0) target = $region49
    $region48: #{tpu_custom_call.1} parent=1 // pred_region
      %84 = dma.done [#allocation6], 256
    $region49: #{tpu_custom_call.1} parent=1 // pred_fallthru
      _
    // Predicated region
    $region50: #{tpu_custom_call.1} parent=1 // pred_check
      _
    $region51: #{tpu_custom_call.1} parent=1 // pred_check_branch
      %86 = sbr.rel (0) target = $region53
    $region52: #{tpu_custom_call.1} parent=1 // pred_region
      %87 = dma.done [#allocation9], 256
    $region53: #{tpu_custom_call.1} parent=1 // pred_fallthru
      _
    %v89 = vld [vmem:[#allocation2] sm:$0xff]
    %v90 = vpack.c.bf16 %v89, %v89
    %v91 = vld [vmem:[#allocation5] sm:$0xf]
    %v92 = vld [vmem:[#allocation5 + $0x4] sm:$0x3]
    %v93 = vld [vmem:[%s2] sm:$0x1]
    %v95 = vlaneseq
    %v96 = vshrl.u32 %v95, 7
    %v97 = vsub.s32 0, %v96
    %v98 = vrot.slane %v93, %v97
    %v102 = vunpack.c.l.b16 %v91
    %v103 = vunpack.c.l.b16 %v92
    %v104 = vpack.c.b16 %v103, %v102
    %vm105 = vcmask 97280
    %v107 = vsel %vm105, %v90, 0
    %vm109 = vcmask 1045504
    %v111 = vsel %vm109, %v104, 0
    %113 = vmatprep.subr.bf16.mxu0 0
    %114 = vmatpush1.bf16.msra.mxu0 %v111
    %115 = vmatprep.subr.bf16.mxu0 0
    %116 = vmatpush1.bf16.msra.mxu0 0
    %117 = vmatprep.subr.bf16.mxu0 0
    %118 = vmatpush1.bf16.msra.mxu0 0
    %119 = vmatprep.subr.bf16.mxu0 0
    %120 = vmatpush1.bf16.msra.mxu0 0
    %121 = vmatprep.subr.bf16.mxu0 0
    %122 = vmatpush1.bf16.msra.mxu0 0
    %123 = vmatprep.subr.bf16.mxu0 0
    %124 = vmatpush1.bf16.msra.mxu0 0
    %125 = vmatprep.subr.bf16.mxu0 0
    %126 = vmatpush1.bf16.msra.mxu0 0
    %127 = vmatprep.subr.bf16.mxu0 0
    %128 = vmatpush1.bf16.msra.mxu0 0
    %129 = vmatprep.subr.bf16.mxu0 0
    %130 = vmatpush1.bf16.msra.mxu0 0
    %131 = vmatprep.subr.bf16.mxu0 0
    %132 = vmatpush1.bf16.msra.mxu0 0
    %133 = vmatprep.subr.bf16.mxu0 0
    %134 = vmatpush1.bf16.msra.mxu0 0
    %135 = vmatprep.subr.bf16.mxu0 0
    %136 = vmatpush1.bf16.msra.mxu0 0
    %137 = vmatprep.subr.bf16.mxu0 0
    %138 = vmatpush1.bf16.msra.mxu0 0
    %139 = vmatprep.subr.bf16.mxu0 0
    %140 = vmatpush1.bf16.msra.mxu0 0
    %141 = vmatprep.subr.bf16.mxu0 0
    %142 = vmatpush1.bf16.msra.mxu0 0
    %143 = vmatprep.subr.bf16.mxu0 0
    %144 = vmatpush1.bf16.msra.mxu0 0
    %145 = vmatprep.mubr.bf16.mxu0 0
    %146 = vmatmul.mubr.bf16.gmra.mrb[0].mxu0 %v107
    %v147 = vpop.f32.mrb[0].mxu0
    %v148 = vadd.f32 %v98, %v147
    %v149 = vpop.f32.mrb[0].mxu0
    %v150 = vpop.f32.mrb[0].mxu0
    %v151 = vpop.f32.mrb[0].mxu0
    %152 = vdwg.mxu0
    %v153 = vmax.f32 %v148, 0.0
    %v154 = vpack.c.bf16 %v153, %v153
    %v155 = vld [vmem:[#allocation7] sm:$0xf]
    %v156 = vld [vmem:[#allocation7 + $0x4] sm:$0xf]
    %v157 = vld [vmem:[#allocation7 + $0x8] sm:$0xf]
    %v158 = vld [vmem:[#allocation7 + $0xc] sm:$0xf]
    %v159 = vld [vmem:[%s4] sm:$0x1]
    %v161 = vlaneseq
    %v162 = vshrl.u32 %v161, 7
    %v163 = vsub.s32 0, %v162
    %v164 = vrot.slane %v159, %v163
    %v170 = vunpack.c.l.b16 %v155
    %v171 = vunpack.c.l.b16 %v156
    %v172 = vunpack.c.l.b16 %v157
    %v173 = vunpack.c.l.b16 %v158
    %v174 = vpack.c.b16 %v171, %v170
    %v175 = vpack.c.b16 %v173, %v172
    %vm178 = vcmask 261120
    %v180 = vsel %vm178, %v154, 0
    %182 = vmatprep.subr.bf16.mxu0 0
    %183 = vmatpush1.bf16.msra.mxu0 %v174
    %184 = vmatprep.subr.bf16.mxu0 0
    %185 = vmatpush1.bf16.msra.mxu0 %v175
    %186 = vmatprep.subr.bf16.mxu0 0
    %187 = vmatpush1.bf16.msra.mxu0 0
    %188 = vmatprep.subr.bf16.mxu0 0
    %189 = vmatpush1.bf16.msra.mxu0 0
    %190 = vmatprep.subr.bf16.mxu0 0
    %191 = vmatpush1.bf16.msra.mxu0 0
    %192 = vmatprep.subr.bf16.mxu0 0
    %193 = vmatpush1.bf16.msra.mxu0 0
    %194 = vmatprep.subr.bf16.mxu0 0
    %195 = vmatpush1.bf16.msra.mxu0 0
    %196 = vmatprep.subr.bf16.mxu0 0
    %197 = vmatpush1.bf16.msra.mxu0 0
    %198 = vmatprep.subr.bf16.mxu0 0
    %199 = vmatpush1.bf16.msra.mxu0 0
    %200 = vmatprep.subr.bf16.mxu0 0
    %201 = vmatpush1.bf16.msra.mxu0 0
    %202 = vmatprep.subr.bf16.mxu0 0
    %203 = vmatpush1.bf16.msra.mxu0 0
    %204 = vmatprep.subr.bf16.mxu0 0
    %205 = vmatpush1.bf16.msra.mxu0 0
    %206 = vmatprep.subr.bf16.mxu0 0
    %207 = vmatpush1.bf16.msra.mxu0 0
    %208 = vmatprep.subr.bf16.mxu0 0
    %209 = vmatpush1.bf16.msra.mxu0 0
    %210 = vmatprep.subr.bf16.mxu0 0
    %211 = vmatpush1.bf16.msra.mxu0 0
    %212 = vmatprep.subr.bf16.mxu0 0
    %213 = vmatpush1.bf16.msra.mxu0 0
    %214 = vmatprep.mubr.bf16.mxu0 0
    %215 = vmatmul.mubr.bf16.gmra.mrb[0].mxu0 %v180
    %v216 = vpop.f32.mrb[0].mxu0
    %v217 = vadd.f32 %v164, %v216
    %v218 = vpop.f32.mrb[0].mxu0
    %v219 = vpop.f32.mrb[0].mxu0
    %v220 = vpop.f32.mrb[0].mxu0
    %221 = vdwg.mxu0
    %v222 = vmax.f32 %v217, 0.0
    %v223 = vpack.c.bf16 %v222, %v222
    %v224 = vld [vmem:[%s5] sm:$0xf]
    %v225 = vld [vmem:[%s5 + $0x4] sm:$0xf]
    %v226 = vld [vmem:[%s5 + $0x8] sm:$0xf]
    %v227 = vld [vmem:[%s5 + $0xc] sm:$0xf]
    %v228 = vld [vmem:[%s6] sm:$0x1]
    %v230 = vlaneseq
    %v231 = vshrl.u32 %v230, 7
    %v232 = vsub.s32 0, %v231
    %v233 = vrot.slane %v228, %v232
    %v239 = vunpack.c.l.b16 %v224
    %v240 = vunpack.c.l.b16 %v225
    %v241 = vunpack.c.l.b16 %v226
    %v242 = vunpack.c.l.b16 %v227
    %v243 = vpack.c.b16 %v240, %v239
    %v244 = vpack.c.b16 %v242, %v241
    %v248 = vsel %vm178, %v223, 0
    %250 = vmatprep.subr.bf16.mxu0 0
    %251 = vmatpush1.bf16.msra.mxu0 %v243
    %252 = vmatprep.subr.bf16.mxu0 0
    %253 = vmatpush1.bf16.msra.mxu0 %v244
    %254 = vmatprep.subr.bf16.mxu0 0
    %255 = vmatpush1.bf16.msra.mxu0 0
    %256 = vmatprep.subr.bf16.mxu0 0
    %257 = vmatpush1.bf16.msra.mxu0 0
    %258 = vmatprep.subr.bf16.mxu0 0
    %259 = vmatpush1.bf16.msra.mxu0 0
    %260 = vmatprep.subr.bf16.mxu0 0
    %261 = vmatpush1.bf16.msra.mxu0 0
    %262 = vmatprep.subr.bf16.mxu0 0
    %263 = vmatpush1.bf16.msra.mxu0 0
    %264 = vmatprep.subr.bf16.mxu0 0
    %265 = vmatpush1.bf16.msra.mxu0 0
    %266 = vmatprep.subr.bf16.mxu0 0
    %267 = vmatpush1.bf16.msra.mxu0 0
    %268 = vmatprep.subr.bf16.mxu0 0
    %269 = vmatpush1.bf16.msra.mxu0 0
    %270 = vmatprep.subr.bf16.mxu0 0
    %271 = vmatpush1.bf16.msra.mxu0 0
    %272 = vmatprep.subr.bf16.mxu0 0
    %273 = vmatpush1.bf16.msra.mxu0 0
    %274 = vmatprep.subr.bf16.mxu0 0
    %275 = vmatpush1.bf16.msra.mxu0 0
    %276 = vmatprep.subr.bf16.mxu0 0
    %277 = vmatpush1.bf16.msra.mxu0 0
    %278 = vmatprep.subr.bf16.mxu0 0
    %279 = vmatpush1.bf16.msra.mxu0 0
    %280 = vmatprep.subr.bf16.mxu0 0
    %281 = vmatpush1.bf16.msra.mxu0 0
    %282 = vmatprep.mubr.bf16.mxu0 0
    %283 = vmatmul.mubr.bf16.gmra.mrb[0].mxu0 %v248
    %v284 = vpop.f32.mrb[0].mxu0
    %v285 = vadd.f32 %v233, %v284
    %v286 = vpop.f32.mrb[0].mxu0
    %v287 = vpop.f32.mrb[0].mxu0
    %v288 = vpop.f32.mrb[0].mxu0
    %289 = vdwg.mxu0
    %v290 = vmax.f32 %v285, 0.0
    %v291 = vpack.c.bf16 %v290, %v290
    %v292 = vld [vmem:[#allocation8] sm:$0xf]
    %v293 = vld [vmem:[#allocation8 + $0x4] sm:$0xf]
    %v294 = vld [vmem:[#allocation8 + $0x8] sm:$0xf]
    %v295 = vld [vmem:[#allocation8 + $0xc] sm:$0xf]
    %v296 = vld [vmem:[%s8] sm:$0x1]
    %v298 = vlaneseq
    %v299 = vshrl.u32 %v298, 7
    %v300 = vsub.s32 0, %v299
    %v301 = vrot.slane %v296, %v300
    %v307 = vunpack.c.l.b16 %v292
    %v308 = vunpack.c.l.b16 %v293
    %v309 = vunpack.c.l.b16 %v294
    %v310 = vunpack.c.l.b16 %v295
    %v311 = vpack.c.b16 %v308, %v307
    %v312 = vpack.c.b16 %v310, %v309
    %v316 = vsel %vm178, %v291, 0
    %318 = vmatprep.subr.bf16.mxu0 0
    %319 = vmatpush1.bf16.msra.mxu0 %v311
    %320 = vmatprep.subr.bf16.mxu0 0
    %321 = vmatpush1.bf16.msra.mxu0 %v312
    %322 = vmatprep.subr.bf16.mxu0 0
    %323 = vmatpush1.bf16.msra.mxu0 0
    %324 = vmatprep.subr.bf16.mxu0 0
    %325 = vmatpush1.bf16.msra.mxu0 0
    %326 = vmatprep.subr.bf16.mxu0 0
    %327 = vmatpush1.bf16.msra.mxu0 0
    %328 = vmatprep.subr.bf16.mxu0 0
    %329 = vmatpush1.bf16.msra.mxu0 0
    %330 = vmatprep.subr.bf16.mxu0 0
    %331 = vmatpush1.bf16.msra.mxu0 0
    %332 = vmatprep.subr.bf16.mxu0 0
    %333 = vmatpush1.bf16.msra.mxu0 0
    %334 = vmatprep.subr.bf16.mxu0 0
    %335 = vmatpush1.bf16.msra.mxu0 0
    %336 = vmatprep.subr.bf16.mxu0 0
    %337 = vmatpush1.bf16.msra.mxu0 0
    %338 = vmatprep.subr.bf16.mxu0 0
    %339 = vmatpush1.bf16.msra.mxu0 0
    %340 = vmatprep.subr.bf16.mxu0 0
    %341 = vmatpush1.bf16.msra.mxu0 0
    %342 = vmatprep.subr.bf16.mxu0 0
    %343 = vmatpush1.bf16.msra.mxu0 0
    %344 = vmatprep.subr.bf16.mxu0 0
    %345 = vmatpush1.bf16.msra.mxu0 0
    %346 = vmatprep.subr.bf16.mxu0 0
    %347 = vmatpush1.bf16.msra.mxu0 0
    %348 = vmatprep.subr.bf16.mxu0 0
    %349 = vmatpush1.bf16.msra.mxu0 0
    %350 = vmatprep.mubr.bf16.mxu0 0
    %351 = vmatmul.mubr.bf16.gmra.mrb[0].mxu0 %v316
    %v352 = vpop.f32.mrb[0].mxu0
    %v353 = vadd.f32 %v301, %v352
    %v354 = vpop.f32.mrb[0].mxu0
    %v355 = vpop.f32.mrb[0].mxu0
    %v356 = vpop.f32.mrb[0].mxu0
    %357 = vdwg.mxu0
    %v358 = vpack.c.bf16 %v353, %v353
    %v361 = vunpack.c.l.s4 1966171168
    %v362 = vunpack.c.0.s8 %v361
    %v363 = vlaneseq
    %v364 = vshrl.u32 %v363, 7
    %v365 = vsub.s32 %v362, %v364
    %v366 = vrot.slane %v358, %v365
    %v367 = vcombine.high %v366, %v366
    %v369 = vunpack.c.l.s4 1966171168
    %v370 = vunpack.c.0.s8 %v369
    %v371 = vlaneseq
    %v372 = vshrl.u32 %v371, 7
    %v373 = vsub.s32 %v370, %v372
    %v374 = vrot.slane %v366, %v373
    %v376 = vunpack.c.l.s4 1966171168
    %v377 = vunpack.c.0.s8 %v376
    %v378 = vlaneseq
    %v379 = vshrl.u32 %v378, 7
    %v380 = vsub.s32 %v377, %v379
    %v381 = vrot.slane %v367, %v380
    %v382 = vcombine.high %v374, %v374
    %v383 = vcombine.high %v381, %v381
    %388 = vst [vmem:[#allocation10] sm:$0x1] %v374
    %389 = vst [vmem:[#allocation10 + $0x1] sm:$0x1] %v381
    %390 = vst [vmem:[#allocation10 + $0x2] sm:$0x1] %v382
    %391 = vst [vmem:[#allocation10 + $0x3] sm:$0x1] %v383
    // Predicated region
    $region54: #{tpu_custom_call.1} parent=1 // pred_check
      _
    $region55: #{tpu_custom_call.1} parent=1 // pred_check_branch
      %393 = sbr.rel (0) target = $region57
    $region56: #{tpu_custom_call.1} parent=1 // pred_region
      %s395 = ssub.s32 64, 16
      %396 = vsyncadd [#allocation4], %s395
      %s397 = sshll.u32 [#allocation10], 4
      %s398 = int_to_ptr.vmem [resolvable:$true] %s397
      %403 = dma.vmem_to_hbm [thread:$0]  %s398, 16, %s9, [#allocation4], 16, 16, 1
    $region57: #{tpu_custom_call.1} parent=1 // pred_fallthru
      _
    // Predicated region
    $region58: #{tpu_custom_call.1} parent=1 // pred_check
      _
    $region59: #{tpu_custom_call.1} parent=1 // pred_check_branch
      %405 = sbr.rel (0) target = $region61
    $region60: #{tpu_custom_call.1} parent=1 // pred_region
      %406 = dma.done [#allocation4], 64
    $region61: #{tpu_custom_call.1} parent=1 // pred_fallthru
      _
    %407 = vsyncpa [#allocation3], 1
    %408 = vsyncpa [#allocation6], 1
    %409 = vsyncpa [#allocation9], 1
    %410 = vsyncpa [#allocation4], 1

</llo_original>
